<compile_context>
chip_gen: v5e
topology: v5e:2x2
jax: 0.10.0
libtpu: 0.0.40
codegen_flags: <defaults>
</compile_context>

<pallas_src>
import functools

import jax
import jax.numpy as jnp
from jax.experimental import pallas as pl
from jax.experimental.pallas import tpu as pltpu

# Logical sizes of the PyTorch Network (784 -> 128 -> 64 -> 10).
IN_F, H1_F, H2_F, OUT_F = 784, 128, 64, 10
# Lane-aligned (128-wide) sizes for the hidden/output dims used inside the kernel.
H1_P, H2_P, OUT_P = 128, 128, 128


def mlp_kernel(x_ref, w1_ref, b1_ref, w2_ref, b2_ref, w3_ref, b3_ref, o_ref):
    # Cast the input tile to bf16 in-kernel (input DMA stays f32 but we avoid a
    # separate HBM pad/cast pass in the wrapper).
    x = x_ref[...].astype(jnp.bfloat16)
    # d1: Linear(784 -> 128) + ReLU. bf16 matmul, f32 accumulate, f32 elementwise.
    h1 = jnp.dot(x, w1_ref[...], preferred_element_type=jnp.float32)
    h1 = jnp.maximum(h1 + b1_ref[...], 0.0)
    # d2: Linear(128 -> 64) + ReLU (hidden padded 64 -> 128 with zero weights,
    # so padded columns are exactly 0 and ReLU(0) = 0 keeps them inert).
    h2 = jnp.dot(h1.astype(jnp.bfloat16), w2_ref[...],
                 preferred_element_type=jnp.float32)
    h2 = jnp.maximum(h2 + b2_ref[...], 0.0)
    # out: Linear(64 -> 10), padded 10 -> 128 so the writeback is a full
    # unmasked lane-dense tile; real logits live in columns [:10].
    logits = jnp.dot(h2.astype(jnp.bfloat16), w3_ref[...],
                     preferred_element_type=jnp.float32)
    o_ref[...] = (logits + b3_ref[...]).astype(o_ref.dtype)


def prepare_params(w1, b1, w2, b2, w3, b3):
    """One-time weight prep: zero-pad hidden/output dims to 128 lanes, cast weights to bf16."""
    w1p = w1.astype(jnp.bfloat16)                                   # (784, 128) - no padding
    b1p = b1.reshape(1, -1).astype(jnp.float32)                     # (1, 128)
    w2p = jnp.zeros((H1_P, H2_P), jnp.bfloat16).at[:, :H2_F].set(w2.astype(jnp.bfloat16))
    b2p = jnp.zeros((1, H2_P), jnp.float32).at[:, :H2_F].set(b2.reshape(1, -1))
    w3p = jnp.zeros((H2_P, OUT_P), jnp.bfloat16).at[:H2_F, :OUT_F].set(w3.astype(jnp.bfloat16))
    b3p = jnp.zeros((1, OUT_P), jnp.float32).at[:, :OUT_F].set(b3.reshape(1, -1))
    return w1p, b1p, w2p, b2p, w3p, b3p


def _auto_tb(batch):
    """Rows per grid step: big tiles for HBM efficiency (cap 512), but keep
    >= 2 grid steps so the 'parallel' batch axis shards across both v7x cores."""
    half = -(-batch // 2)          # ceil(B / 2)
    half = -(-half // 8) * 8       # round up to a multiple of 8 (sublane rule)
    return max(8, min(512, half))


@functools.partial(jax.jit, static_argnames=("tb",))
def mlp_forward(x, params, *, tb=None):
    w1p, b1p, w2p, b2p, w3p, b3p = params
    B = x.shape[0]
    tb_ = _auto_tb(B) if tb is None else tb
    n_blocks = pl.cdiv(B, tb_)     # ragged last tile handled by Pallas

    def const_spec(shape):
        # Whole-array block, same block index every grid step -> DMA'd once,
        # stays resident in VMEM across all batch tiles.
        return pl.BlockSpec(shape, lambda i: (0, 0))

    out = pl.pallas_call(
        mlp_kernel,
        out_shape=jax.ShapeDtypeStruct((B, OUT_P), jnp.bfloat16),
        grid=(n_blocks,),
        in_specs=[
            pl.BlockSpec((tb_, IN_F), lambda i: (i, 0)),   # x: tiled over batch, unpadded
            const_spec((IN_F, H1_P)), const_spec((1, H1_P)),
            const_spec((H1_P, H2_P)), const_spec((1, H2_P)),
            const_spec((H2_P, OUT_P)), const_spec((1, OUT_P)),
        ],
        out_specs=pl.BlockSpec((tb_, OUT_P), lambda i: (i, 0)),
        compiler_params=pltpu.CompilerParams(
            dimension_semantics=("parallel",)),
    )(x, w1p, b1p, w2p, b2p, w3p, b3p)

    # Slice away the 10 -> 128 output padding; upcast to f32 to match the
    # PyTorch forward's return dtype.
    return out[:, :OUT_F].astype(jnp.float32)


def init_linear(key, in_features, out_features):
    # Deterministic init mimicking torch.nn.Linear default: U(-1/sqrt(in), 1/sqrt(in)).
    kw, kb = jax.random.split(key)
    bound = 1.0 / jnp.sqrt(jnp.float32(in_features))
    # Stored as [in, out] so the kernel does x @ W (equivalent to x @ W_torch.T).
    w = jax.random.uniform(kw, (in_features, out_features), jnp.float32, -bound, bound)
    b = jax.random.uniform(kb, (1, out_features), jnp.float32, -bound, bound)
    return w, b


if __name__ == "__main__":
    key = jax.random.PRNGKey(0)
    kx, k1, k2, k3 = jax.random.split(key, 4)

    # Small batch matching the spec's DataLoader(batch_size=10); not a multiple
    # of the auto tile (8) -> exercises the ragged last batch tile.
    B = 10
    x = jax.random.normal(kx, (B, IN_F), jnp.float32)  # flattened MNIST-sized image

    w1, b1 = init_linear(k1, IN_F, H1_F)
    w2, b2 = init_linear(k2, H1_F, H2_F)
    w3, b3 = init_linear(k3, H2_F, OUT_F)
    params = prepare_params(w1, b1, w2, b2, w3, b3)

    out = mlp_forward(x, params)
    out = jax.block_until_ready(out)

    # Reference check in plain JAX mirroring the kernel's bf16-weight /
    # f32-accumulate / bf16-store math on the same padded parameters.
    w1p, b1p, w2p, b2p, w3p, b3p = params
    xb = x.astype(jnp.bfloat16)
    h1 = jnp.maximum(jnp.dot(xb, w1p, preferred_element_type=jnp.float32) + b1p, 0.0)
    h2 = jnp.maximum(
        jnp.dot(h1.astype(jnp.bfloat16), w2p, preferred_element_type=jnp.float32) + b2p,
        0.0)
    ref_full = (jnp.dot(h2.astype(jnp.bfloat16), w3p,
                        preferred_element_type=jnp.float32) + b3p).astype(jnp.bfloat16)
    ref = ref_full[:, :OUT_F].astype(jnp.float32)

    assert out.shape == (B, OUT_F)
    assert out.dtype == jnp.float32
    assert jnp.allclose(out, ref, atol=1e-2, rtol=1e-2)

    print("KERNEL_OK")
</pallas_src>

<mosaic_0001>
module attributes {stable_mosaic.version = 11 : i64} {
  func.func @mlp_kernel(%arg0: i32, %arg1: memref<8x784xf32, #tpu.memory_space<vmem>>, %arg2: memref<784x128xbf16, #tpu.memory_space<vmem>>, %arg3: memref<1x128xf32, #tpu.memory_space<vmem>>, %arg4: memref<128x128xbf16, #tpu.memory_space<vmem>>, %arg5: memref<1x128xf32, #tpu.memory_space<vmem>>, %arg6: memref<128x128xbf16, #tpu.memory_space<vmem>>, %arg7: memref<1x128xf32, #tpu.memory_space<vmem>>, %arg8: memref<8x128xbf16, #tpu.memory_space<vmem>>) attributes {dimension_semantics = [#tpu.dimension_semantics<parallel>], iteration_bounds = array<i64: 2>, scalar_prefetch = 0 : i64, scratch_operands = 0 : i64, tpu.core_type = #tpu.core_type<tc>, window_params = [{transform_indices = @transform_0, window_bounds = array<i64: 8, 784>}, {pipeline_mode = #tpu.pipeline_mode<synchronous>, transform_indices = @transform_1, window_bounds = array<i64: 784, 128>}, {pipeline_mode = #tpu.pipeline_mode<synchronous>, transform_indices = @transform_2, window_bounds = array<i64: 1, 128>}, {pipeline_mode = #tpu.pipeline_mode<synchronous>, transform_indices = @transform_3, window_bounds = array<i64: 128, 128>}, {pipeline_mode = #tpu.pipeline_mode<synchronous>, transform_indices = @transform_4, window_bounds = array<i64: 1, 128>}, {pipeline_mode = #tpu.pipeline_mode<synchronous>, transform_indices = @transform_5, window_bounds = array<i64: 128, 128>}, {pipeline_mode = #tpu.pipeline_mode<synchronous>, transform_indices = @transform_6, window_bounds = array<i64: 1, 128>}, {transform_indices = @transform_7, window_bounds = array<i64: 8, 128>}]} {
    %c0 = arith.constant 0 : index
    %c0_0 = arith.constant 0 : index
    %0 = vector.load %arg1[%c0, %c0_0] : memref<8x784xf32, #tpu.memory_space<vmem>>, vector<8x784xf32>
    %1 = arith.truncf %0 : vector<8x784xf32> to vector<8x784xbf16>
    %c0_1 = arith.constant 0 : index
    %c0_2 = arith.constant 0 : index
    %2 = vector.load %arg2[%c0_1, %c0_2] : memref<784x128xbf16, #tpu.memory_space<vmem>>, vector<784x128xbf16>
    %cst = arith.constant dense<0.000000e+00> : vector<8x128xf32>
    %3 = tpu.matmul %1, %2, %cst {dimension_numbers = #tpu.dot_dimension_numbers<[1], [0], [0], [1], [0, 0, 1, 1], [], []>} : vector<8x784xbf16>, vector<784x128xbf16>, vector<8x128xf32> -> vector<8x128xf32>
    %c0_3 = arith.constant 0 : index
    %c0_4 = arith.constant 0 : index
    %4 = vector.load %arg3[%c0_3, %c0_4] : memref<1x128xf32, #tpu.memory_space<vmem>>, vector<1x128xf32>
    %5 = vector.broadcast %4 : vector<1x128xf32> to vector<8x128xf32>
    %6 = arith.addf %3, %5 : vector<8x128xf32>
    %cst_5 = arith.constant 0.000000e+00 : f32
    %7 = vector.broadcast %cst_5 : f32 to vector<8x128xf32>
    %8 = arith.maximumf %6, %7 : vector<8x128xf32>
    %9 = arith.truncf %8 : vector<8x128xf32> to vector<8x128xbf16>
    %c0_6 = arith.constant 0 : index
    %c0_7 = arith.constant 0 : index
    %10 = vector.load %arg4[%c0_6, %c0_7] : memref<128x128xbf16, #tpu.memory_space<vmem>>, vector<128x128xbf16>
    %cst_8 = arith.constant dense<0.000000e+00> : vector<8x128xf32>
    %11 = tpu.matmul %9, %10, %cst_8 {dimension_numbers = #tpu.dot_dimension_numbers<[1], [0], [0], [1], [0, 0, 1, 1], [], []>} : vector<8x128xbf16>, vector<128x128xbf16>, vector<8x128xf32> -> vector<8x128xf32>
    %c0_9 = arith.constant 0 : index
    %c0_10 = arith.constant 0 : index
    %12 = vector.load %arg5[%c0_9, %c0_10] : memref<1x128xf32, #tpu.memory_space<vmem>>, vector<1x128xf32>
    %13 = vector.broadcast %12 : vector<1x128xf32> to vector<8x128xf32>
    %14 = arith.addf %11, %13 : vector<8x128xf32>
    %cst_11 = arith.constant 0.000000e+00 : f32
    %15 = vector.broadcast %cst_11 : f32 to vector<8x128xf32>
    %16 = arith.maximumf %14, %15 : vector<8x128xf32>
    %17 = arith.truncf %16 : vector<8x128xf32> to vector<8x128xbf16>
    %c0_12 = arith.constant 0 : index
    %c0_13 = arith.constant 0 : index
    %18 = vector.load %arg6[%c0_12, %c0_13] : memref<128x128xbf16, #tpu.memory_space<vmem>>, vector<128x128xbf16>
    %cst_14 = arith.constant dense<0.000000e+00> : vector<8x128xf32>
    %19 = tpu.matmul %17, %18, %cst_14 {dimension_numbers = #tpu.dot_dimension_numbers<[1], [0], [0], [1], [0, 0, 1, 1], [], []>} : vector<8x128xbf16>, vector<128x128xbf16>, vector<8x128xf32> -> vector<8x128xf32>
    %c0_15 = arith.constant 0 : index
    %c0_16 = arith.constant 0 : index
    %20 = vector.load %arg7[%c0_15, %c0_16] : memref<1x128xf32, #tpu.memory_space<vmem>>, vector<1x128xf32>
    %21 = vector.broadcast %20 : vector<1x128xf32> to vector<8x128xf32>
    %22 = arith.addf %19, %21 : vector<8x128xf32>
    %23 = arith.truncf %22 : vector<8x128xf32> to vector<8x128xbf16>
    %c0_17 = arith.constant 0 : index
    %c0_18 = arith.constant 0 : index
    %24 = vector.load %arg8[%c0_17, %c0_18] : memref<8x128xbf16, #tpu.memory_space<vmem>>, vector<8x128xbf16>
    tpu.vector_store %arg8[%c0_17, %c0_18], %23 {strides = array<i32>} : memref<8x128xbf16, #tpu.memory_space<vmem>>, vector<8x128xbf16>,
    return
  }
  func.func @transform_0(%arg0: i32) -> (i32, i32) {
    %c0_i32 = arith.constant 0 : i32
    %c0_i32_0 = arith.constant 0 : i32
    return %arg0, %c0_i32 : i32, i32
  }
  func.func @transform_1(%arg0: i32) -> (i32, i32) {
    %c0_i32 = arith.constant 0 : i32
    %c0_i32_0 = arith.constant 0 : i32
    %c0_i32_1 = arith.constant 0 : i32
    return %c0_i32, %c0_i32_0 : i32, i32
  }
  func.func @transform_2(%arg0: i32) -> (i32, i32) {
    %c0_i32 = arith.constant 0 : i32
    %c0_i32_0 = arith.constant 0 : i32
    %c0_i32_1 = arith.constant 0 : i32
    return %c0_i32, %c0_i32_0 : i32, i32
  }
  func.func @transform_3(%arg0: i32) -> (i32, i32) {
    %c0_i32 = arith.constant 0 : i32
    %c0_i32_0 = arith.constant 0 : i32
    %c0_i32_1 = arith.constant 0 : i32
    return %c0_i32, %c0_i32_0 : i32, i32
  }
  func.func @transform_4(%arg0: i32) -> (i32, i32) {
    %c0_i32 = arith.constant 0 : i32
    %c0_i32_0 = arith.constant 0 : i32
    %c0_i32_1 = arith.constant 0 : i32
    return %c0_i32, %c0_i32_0 : i32, i32
  }
  func.func @transform_5(%arg0: i32) -> (i32, i32) {
    %c0_i32 = arith.constant 0 : i32
    %c0_i32_0 = arith.constant 0 : i32
    %c0_i32_1 = arith.constant 0 : i32
    return %c0_i32, %c0_i32_0 : i32, i32
  }
  func.func @transform_6(%arg0: i32) -> (i32, i32) {
    %c0_i32 = arith.constant 0 : i32
    %c0_i32_0 = arith.constant 0 : i32
    %c0_i32_1 = arith.constant 0 : i32
    return %c0_i32, %c0_i32_0 : i32, i32
  }
  func.func @transform_7(%arg0: i32) -> (i32, i32) {
    %c0_i32 = arith.constant 0 : i32
    %c0_i32_0 = arith.constant 0 : i32
    return %arg0, %c0_i32 : i32, i32
  }
}

</mosaic_0001>

<llo_original>
// kernel: mlp_forward.1
$region0: #{mlp_forward.1}
  #allocation0 [shape = 'u32[]', space=smem, size = 0x4, offset = 0x4, fixed_abs, tag = 'smem constant byte address 0x4 - core index']
  #allocation1 [shape = 'u32[72,128]{1,0:T(1,128)}', space=vmem, size = 0x9000, scoped, tag = 'internal scratch']
  %s0 = inlined_call_operand.hbm [shape: f32[10,784], index: 0, kind: input, shape index: {}]
  %s1 = inlined_call_operand.hbm [shape: bf16[784,128], index: 1, kind: input, shape index: {}]
  %s2 = inlined_call_operand.vmem [shape: f32[1,128], index: 2, kind: input, shape index: {}]
  %s3 = inlined_call_operand.hbm [shape: bf16[128,128], index: 3, kind: input, shape index: {}]
  %s4 = inlined_call_operand.vmem [shape: f32[1,128], index: 4, kind: input, shape index: {}]
  %s5 = inlined_call_operand.hbm [shape: bf16[128,128], index: 5, kind: input, shape index: {}]
  %s6 = inlined_call_operand.vmem [shape: f32[1,128], index: 6, kind: input, shape index: {}]
  %s7 = inlined_call_operand.vmem [shape: bf16[10,128], index: 7, kind: output, shape index: {}]
  %s8 = sld [smem:[#allocation0]]
  $region77: #{mlp_forward.1} parent=0
    _
  %s10 = ssub.s32 1, %s8
  %s11 = scalar_select 0, %s10, %s8
  $region1: #{mlp_forward.1} parent=0
    #allocation2 [shape = 'u8[57344]{0}', space=vmem, size = 0xe000, scoped, tag = 'input window, operand 0']
    #allocation3 [shape = 's32[2]{0}', space=sflag, size = 0x8, scoped, tag = 'scoped memory for mlp_forward.1']
    #allocation4 [shape = 'u8[200704]{0}', space=vmem, size = 0x31000, scoped, tag = 'input window, operand 1, single buffered']
    #allocation5 [shape = 's32[1]{0}', space=sflag, size = 0x4, scoped, tag = 'scoped memory for mlp_forward.1']
    #allocation6 [shape = 'u8[32768]{0}', space=vmem, size = 0x8000, scoped, tag = 'input window, operand 3, single buffered']
    #allocation7 [shape = 'u8[32768]{0}', space=vmem, size = 0x8000, scoped, tag = 'input window, operand 5, single buffered']
    #allocation8 [shape = 's32[1]{0}', space=sflag, size = 0x4, scoped, tag = 'scoped memory for mlp_forward.1']
    %12 = vsyncpa [#allocation3], 0
    %s13 = scalar_lea.sflag [#allocation3], 1
    %14 = vsyncpa %s13, 0
    %15 = vsyncpa [#allocation5], 0
    %16 = vsyncpa [#allocation8], 0
    loop: start=0, step=1, limit=4
    $region2: #{mlp_forward.1} parent=1 // loop_pre_header
      _
    $region3: #{mlp_forward.1} parent=1 // loop_header
      %s18 = sphi 0, %s22
      %p19 = scmp.ge.s32.totalorder %s18, 4
      %s28 = sphi 0, %s30
      %s31 = sphi 0, %s28
      %s32 = sphi 0, %s31
      %s48 = sphi 0, %s32
      %s52 = sphi 0, %s52
      %s54 = sphi 0, %s52
      %s55 = sphi 0, %s54
      %s69 = sphi 0, %s55
      %s73 = sphi 0, %s73
      %s75 = sphi 0, %s73
      %s76 = sphi 0, %s75
      %s90 = sphi 0, %s76
      %s94 = sphi 0, %s94
      %s96 = sphi 0, %s94
      %s97 = sphi 0, %s96
      %s111 = sphi 0, %s97
      %s115 = sphi 0, %s115
      %s117 = sphi 0, %s115
      %s118 = sphi 0, %s117
      %s132 = sphi 0, %s118
      %s136 = sphi 0, %s136
      %s138 = sphi 0, %s136
      %s139 = sphi 0, %s138
      %s153 = sphi 0, %s139
      %s157 = sphi 0, %s157
      %s159 = sphi 0, %s157
      %s160 = sphi 0, %s159
      %s174 = sphi 0, %s160
      %s180 = sphi 0, %s182
      %s183 = sphi 0, %s180
      %s184 = sphi 0, %s183
      %s200 = sphi 0, %s184
    $region4: #{mlp_forward.1} parent=1 // loop_header_branch
      %21 = sbr.rel (%p19) target = $region8
    $region5: #{mlp_forward.1} parent=1 // loop_body
      %s23 = ssub.s32 %s18, 1
      %s24 = ssub.s32 %s18, 2
      %s25 = sadd.s32 %s18, 1
      %s26 = ssub.s32 %s18, %s25
      %p27 = scmp.eq.s32.totalorder %s26, 0
      %s29 = sadd.s32 %s28, 1
      %s30 = scalar_select %p27, %s28, %s29
      %p33 = pneg %p27
      %p34 = scmp.eq.s32.totalorder %s18, 1
      %p35 = por %p33, %p34
      %p36 = scmp.ne.s32.totalorder %s28, %s31
      %p37 = scmp.eq.s32.totalorder %s18, 0
      %p38 = por %p36, %p37
      %p39 = scmp.ne.s32.totalorder %s28, %s31
      %p40 = scmp.eq.s32.totalorder %s23, 1
      %p41 = por %p39, %p40
      %p42 = scmp.ne.s32.totalorder %s31, %s32
      %p43 = scmp.eq.s32.totalorder %s23, 0
      %p44 = por %p42, %p43
      %p45 = scmp.ne.s32.totalorder %s31, %s32
      %p46 = scmp.eq.s32.totalorder %s24, 1
      %p47 = por %p45, %p46
      %p49 = scmp.ne.s32.totalorder %s32, %s48
      %p50 = scmp.eq.s32.totalorder %s24, 0
      %p51 = por %p49, %p50
      %s53 = sadd.s32 %s52, 1
      %p56 = scmp.eq.s32.totalorder %s18, 1
      %p57 = scmp.ne.s32.totalorder %s52, %s54
      %p58 = scmp.eq.s32.totalorder %s18, 0
      %p59 = por %p57, %p58
      %p60 = scmp.ne.s32.totalorder %s52, %s54
      %p61 = scmp.eq.s32.totalorder %s23, 1
      %p62 = por %p60, %p61
      %p63 = scmp.ne.s32.totalorder %s54, %s55
      %p64 = scmp.eq.s32.totalorder %s23, 0
      %p65 = por %p63, %p64
      %p66 = scmp.ne.s32.totalorder %s54, %s55
      %p67 = scmp.eq.s32.totalorder %s24, 1
      %p68 = por %p66, %p67
      %p70 = scmp.ne.s32.totalorder %s55, %s69
      %p71 = scmp.eq.s32.totalorder %s24, 0
      %p72 = por %p70, %p71
      %s74 = sadd.s32 %s73, 1
      %p77 = scmp.eq.s32.totalorder %s18, 1
      %p78 = scmp.ne.s32.totalorder %s73, %s75
      %p79 = scmp.eq.s32.totalorder %s18, 0
      %p80 = por %p78, %p79
      %p81 = scmp.ne.s32.totalorder %s73, %s75
      %p82 = scmp.eq.s32.totalorder %s23, 1
      %p83 = por %p81, %p82
      %p84 = scmp.ne.s32.totalorder %s75, %s76
      %p85 = scmp.eq.s32.totalorder %s23, 0
      %p86 = por %p84, %p85
      %p87 = scmp.ne.s32.totalorder %s75, %s76
      %p88 = scmp.eq.s32.totalorder %s24, 1
      %p89 = por %p87, %p88
      %p91 = scmp.ne.s32.totalorder %s76, %s90
      %p92 = scmp.eq.s32.totalorder %s24, 0
      %p93 = por %p91, %p92
      %s95 = sadd.s32 %s94, 1
      %p98 = scmp.eq.s32.totalorder %s18, 1
      %p99 = scmp.ne.s32.totalorder %s94, %s96
      %p100 = scmp.eq.s32.totalorder %s18, 0
      %p101 = por %p99, %p100
      %p102 = scmp.ne.s32.totalorder %s94, %s96
      %p103 = scmp.eq.s32.totalorder %s23, 1
      %p104 = por %p102, %p103
      %p105 = scmp.ne.s32.totalorder %s96, %s97
      %p106 = scmp.eq.s32.totalorder %s23, 0
      %p107 = por %p105, %p106
      %p108 = scmp.ne.s32.totalorder %s96, %s97
      %p109 = scmp.eq.s32.totalorder %s24, 1
      %p110 = por %p108, %p109
      %p112 = scmp.ne.s32.totalorder %s97, %s111
      %p113 = scmp.eq.s32.totalorder %s24, 0
      %p114 = por %p112, %p113
      %s116 = sadd.s32 %s115, 1
      %p119 = scmp.eq.s32.totalorder %s18, 1
      %p120 = scmp.ne.s32.totalorder %s115, %s117
      %p121 = scmp.eq.s32.totalorder %s18, 0
      %p122 = por %p120, %p121
      %p123 = scmp.ne.s32.totalorder %s115, %s117
      %p124 = scmp.eq.s32.totalorder %s23, 1
      %p125 = por %p123, %p124
      %p126 = scmp.ne.s32.totalorder %s117, %s118
      %p127 = scmp.eq.s32.totalorder %s23, 0
      %p128 = por %p126, %p127
      %p129 = scmp.ne.s32.totalorder %s117, %s118
      %p130 = scmp.eq.s32.totalorder %s24, 1
      %p131 = por %p129, %p130
      %p133 = scmp.ne.s32.totalorder %s118, %s132
      %p134 = scmp.eq.s32.totalorder %s24, 0
      %p135 = por %p133, %p134
      %s137 = sadd.s32 %s136, 1
      %p140 = scmp.eq.s32.totalorder %s18, 1
      %p141 = scmp.ne.s32.totalorder %s136, %s138
      %p142 = scmp.eq.s32.totalorder %s18, 0
      %p143 = por %p141, %p142
      %p144 = scmp.ne.s32.totalorder %s136, %s138
      %p145 = scmp.eq.s32.totalorder %s23, 1
      %p146 = por %p144, %p145
      %p147 = scmp.ne.s32.totalorder %s138, %s139
      %p148 = scmp.eq.s32.totalorder %s23, 0
      %p149 = por %p147, %p148
      %p150 = scmp.ne.s32.totalorder %s138, %s139
      %p151 = scmp.eq.s32.totalorder %s24, 1
      %p152 = por %p150, %p151
      %p154 = scmp.ne.s32.totalorder %s139, %s153
      %p155 = scmp.eq.s32.totalorder %s24, 0
      %p156 = por %p154, %p155
      %s158 = sadd.s32 %s157, 1
      %p161 = scmp.eq.s32.totalorder %s18, 1
      %p162 = scmp.ne.s32.totalorder %s157, %s159
      %p163 = scmp.eq.s32.totalorder %s18, 0
      %p164 = por %p162, %p163
      %p165 = scmp.ne.s32.totalorder %s157, %s159
      %p166 = scmp.eq.s32.totalorder %s23, 1
      %p167 = por %p165, %p166
      %p168 = scmp.ne.s32.totalorder %s159, %s160
      %p169 = scmp.eq.s32.totalorder %s23, 0
      %p170 = por %p168, %p169
      %p171 = scmp.ne.s32.totalorder %s159, %s160
      %p172 = scmp.eq.s32.totalorder %s24, 1
      %p173 = por %p171, %p172
      %p175 = scmp.ne.s32.totalorder %s160, %s174
      %p176 = scmp.eq.s32.totalorder %s24, 0
      %p177 = por %p175, %p176
      %s178 = ssub.s32 %s18, %s25
      %p179 = scmp.eq.s32.totalorder %s178, 0
      %s181 = sadd.s32 %s180, 1
      %s182 = scalar_select %p179, %s180, %s181
      %p185 = pneg %p179
      %p186 = scmp.eq.s32.totalorder %s18, 1
      %p187 = por %p185, %p186
      %p188 = scmp.ne.s32.totalorder %s180, %s183
      %p189 = scmp.eq.s32.totalorder %s18, 0
      %p190 = por %p188, %p189
      %p191 = scmp.ne.s32.totalorder %s180, %s183
      %p192 = scmp.eq.s32.totalorder %s23, 1
      %p193 = por %p191, %p192
      %p194 = scmp.ne.s32.totalorder %s183, %s184
      %p195 = scmp.eq.s32.totalorder %s23, 0
      %p196 = por %p194, %p195
      %p197 = scmp.ne.s32.totalorder %s183, %s184
      %p198 = scmp.eq.s32.totalorder %s24, 1
      %p199 = por %p197, %p198
      %p201 = scmp.ne.s32.totalorder %s184, %s200
      %p202 = scmp.eq.s32.totalorder %s24, 0
      %p203 = por %p201, %p202
      %p204 = scmp.le.s32.totalorder 1, %s18
      %p205 = scmp.lt.s32.totalorder %s18, 3
      %p206 = pnand %p204, %p205
      %p207 = pneg %p206
      // Predicated region
      $region9: #{mlp_forward.1} parent=5 // pred_check
        _
      $region10: #{mlp_forward.1} parent=5 // pred_check_branch
        %209 = sbr.rel (%p206) target = $region12
      $region11: #{mlp_forward.1} parent=5 // pred_region
        %s210 = ssub.s32 %s18, 1
        // Predicated region
        $region13: #{mlp_forward.1} parent=11 // pred_check
          %p211 = pneg %p65
        $region14: #{mlp_forward.1} parent=11 // pred_check_branch
          %213 = sbr.rel (%p211) target = $region16
        $region15: #{mlp_forward.1} parent=11 // pred_region
          %215 = vsyncadd [#allocation5], 0
          %s216 = sshll.u32 %s1, 4
          %s217 = int_to_ptr.hbm [resolvable:$true] %s216
          %s218 = sshll.u32 [#allocation4], 4
          %s219 = int_to_ptr.vmem [resolvable:$true] %s218
          %224 = dma.hbm_to_vmem [thread:$0]  %s217, 6272, %s219, [#allocation5], 64, 64, 4
        $region16: #{mlp_forward.1} parent=11 // pred_fallthru
          _
        // Predicated region
        $region17: #{mlp_forward.1} parent=11 // pred_check
          %p225 = pneg %p86
        $region18: #{mlp_forward.1} parent=11 // pred_check_branch
          %227 = sbr.rel (%p225) target = $region20
        $region19: #{mlp_forward.1} parent=11 // pred_region
          _
        $region20: #{mlp_forward.1} parent=11 // pred_fallthru
          _
        // Predicated region
        $region21: #{mlp_forward.1} parent=11 // pred_check
          %p228 = pneg %p107
        $region22: #{mlp_forward.1} parent=11 // pred_check_branch
          %230 = sbr.rel (%p228) target = $region24
        $region23: #{mlp_forward.1} parent=11 // pred_region
          %232 = vsyncadd [#allocation5], 0
          %s233 = sshll.u32 %s3, 4
          %s234 = int_to_ptr.hbm [resolvable:$true] %s233
          %s235 = sshll.u32 [#allocation6], 4
          %s236 = int_to_ptr.vmem [resolvable:$true] %s235
          %241 = dma.hbm_to_vmem [thread:$0]  %s234, 1024, %s236, [#allocation5], 64, 64, 4
        $region24: #{mlp_forward.1} parent=11 // pred_fallthru
          _
        // Predicated region
        $region25: #{mlp_forward.1} parent=11 // pred_check
          %p242 = pneg %p128
        $region26: #{mlp_forward.1} parent=11 // pred_check_branch
          %244 = sbr.rel (%p242) target = $region28
        $region27: #{mlp_forward.1} parent=11 // pred_region
          _
        $region28: #{mlp_forward.1} parent=11 // pred_fallthru
          _
        // Predicated region
        $region29: #{mlp_forward.1} parent=11 // pred_check
          %p245 = pneg %p149
        $region30: #{mlp_forward.1} parent=11 // pred_check_branch
          %247 = sbr.rel (%p245) target = $region32
        $region31: #{mlp_forward.1} parent=11 // pred_region
          %249 = vsyncadd [#allocation8], 0
          %s250 = sshll.u32 %s5, 4
          %s251 = int_to_ptr.hbm [resolvable:$true] %s250
          %s252 = sshll.u32 [#allocation7], 4
          %s253 = int_to_ptr.vmem [resolvable:$true] %s252
          %258 = dma.hbm_to_vmem [thread:$0]  %s251, 1024, %s253, [#allocation8], 64, 64, 4
        $region32: #{mlp_forward.1} parent=11 // pred_fallthru
          _
        // Predicated region
        $region33: #{mlp_forward.1} parent=11 // pred_check
          %p259 = pneg %p170
        $region34: #{mlp_forward.1} parent=11 // pred_check_branch
          %261 = sbr.rel (%p259) target = $region36
        $region35: #{mlp_forward.1} parent=11 // pred_region
          _
        $region36: #{mlp_forward.1} parent=11 // pred_fallthru
          _
      $region12: #{mlp_forward.1} parent=5 // pred_fallthru
        _
      %p262 = scmp.lt.s32.totalorder %s18, 2
      // Predicated region
      $region37: #{mlp_forward.1} parent=5 // pred_check
        %p263 = pneg %p262
      $region38: #{mlp_forward.1} parent=5 // pred_check_branch
        %265 = sbr.rel (%p263) target = $region40
      $region39: #{mlp_forward.1} parent=5 // pred_region
        // Predicated region
        $region41: #{mlp_forward.1} parent=39 // pred_check
          %p266 = pneg %p38
        $region42: #{mlp_forward.1} parent=39 // pred_check_branch
          %268 = sbr.rel (%p266) target = $region44
        $region43: #{mlp_forward.1} parent=39 // pred_region
          %s269 = sand.u32 %s28, 1
          %s270 = scalar_lea.sflag [#allocation3], %s269
          %s271 = sand.u32 %s28, 1
          %s272 = smul.addr %s271, 56
          %s273 = scalar_lea.vmem [#allocation2], %s272
          %275 = vsyncadd %s270, 0
          %s276 = smul.addr %s18, 7
          %s277 = smul.addr %s276, 8
          %s278 = scalar_lea.hbm %s0, %s277
          %s280 = sshll.u32 %s278, 4
          %s281 = int_to_ptr.hbm [resolvable:$true] %s280
          %s282 = sshll.u32 %s273, 4
          %s283 = int_to_ptr.vmem [resolvable:$true] %s282
          %285 = dma.hbm_to_vmem [thread:$0]  %s281, 896, %s283, %s270
        $region44: #{mlp_forward.1} parent=39 // pred_fallthru
          _
      $region40: #{mlp_forward.1} parent=5 // pred_fallthru
        _
      %p286 = scmp.le.s32.totalorder 1, %s18
      %p287 = scmp.lt.s32.totalorder %s18, 3
      %p288 = pnand %p286, %p287
      %p289 = pneg %p288
      // Predicated region
      $region45: #{mlp_forward.1} parent=5 // pred_check
        _
      $region46: #{mlp_forward.1} parent=5 // pred_check_branch
        %291 = sbr.rel (%p288) target = $region48
      $region47: #{mlp_forward.1} parent=5 // pred_region
        %s292 = ssub.s32 %s18, 1
        %s293 = sand.u32 %s31, 1
        %s294 = scalar_lea.sflag [#allocation3], %s293
        %s295 = sand.u32 %s31, 1
        %s296 = smul.addr %s295, 56
        %s297 = scalar_lea.vmem [#allocation2], %s296
        // Predicated region
        $region49: #{mlp_forward.1} parent=47 // pred_check
          %p298 = pneg %p44
        $region50: #{mlp_forward.1} parent=47 // pred_check_branch
          %300 = sbr.rel (%p298) target = $region52
        $region51: #{mlp_forward.1} parent=47 // pred_region
          %302 = dma.done %s294, 896
        $region52: #{mlp_forward.1} parent=47 // pred_fallthru
          _
        // Predicated region
        $region53: #{mlp_forward.1} parent=47 // pred_check
          %p303 = pneg %p65
        $region54: #{mlp_forward.1} parent=47 // pred_check_branch
          %305 = sbr.rel (%p303) target = $region56
        $region55: #{mlp_forward.1} parent=47 // pred_region
          %307 = dma.done [#allocation5], 6272
        $region56: #{mlp_forward.1} parent=47 // pred_fallthru
          _
        // Predicated region
        $region57: #{mlp_forward.1} parent=47 // pred_check
          %p308 = pneg %p107
        $region58: #{mlp_forward.1} parent=47 // pred_check_branch
          %310 = sbr.rel (%p308) target = $region60
        $region59: #{mlp_forward.1} parent=47 // pred_region
          %312 = dma.done [#allocation5], 1024
        $region60: #{mlp_forward.1} parent=47 // pred_fallthru
          _
        // Predicated region
        $region61: #{mlp_forward.1} parent=47 // pred_check
          %p313 = pneg %p149
        $region62: #{mlp_forward.1} parent=47 // pred_check_branch
          %315 = sbr.rel (%p313) target = $region64
        $region63: #{mlp_forward.1} parent=47 // pred_region
          %317 = dma.done [#allocation8], 1024
        $region64: #{mlp_forward.1} parent=47 // pred_fallthru
          _
        %s318 = sand.u32 %s31, 1
        %s319 = scalar_lea.sflag [#allocation3], %s318
        %s320 = sand.u32 %s31, 1
        %s321 = smul.addr %s320, 56
        %s322 = scalar_lea.vmem [#allocation2], %s321
        %p323 = pneg %p44
        %p324 = pneg %p41
        %p325 = pneg %p65
        %p326 = pneg %p62
        %p327 = pneg %p86
        %p328 = pneg %p83
        %p329 = pneg %p107
        %p330 = pneg %p104
        %p331 = pneg %p128
        %p332 = pneg %p125
        %p333 = pneg %p149
        %p334 = pneg %p146
        %p335 = pneg %p170
        %p336 = pneg %p167
        %p337 = pneg %p196
        %p338 = pneg %p193
        %p339 = scmp.lt.s32.totalorder %s23, 1
        %s340 = scalar_select %p339, %s23, 1
        %s341 = smul.addr %s340, 4
        %s342 = scalar_lea.vmem %s7, %s341
        %p343 = scmp.lt.s32.totalorder %s23, 1
        %s344 = scalar_select %p343, %s23, 1
        %s345 = smul.addr %s344, 4
        %s346 = scalar_lea.vmem %s7, %s345
        %v348 = vld [vmem:[%s297] sm:$0xff]
        %v349 = vld [vmem:[%s297 + $0x8] sm:$0xff]
        %v350 = vld [vmem:[%s297 + $0x10] sm:$0xff]
        %v351 = vld [vmem:[%s297 + $0x18] sm:$0xff]
        %v352 = vld [vmem:[%s297 + $0x20] sm:$0xff]
        %v353 = vld [vmem:[%s297 + $0x28] sm:$0xff]
        %v354 = vld [vmem:[%s297 + $0x30] sm:$0xff]
        %v355 = vpack.c.bf16 %v348, %v348
        %v356 = vpack.c.bf16 %v349, %v349
        %v357 = vpack.c.bf16 %v350, %v350
        %v358 = vpack.c.bf16 %v351, %v351
        %v359 = vpack.c.bf16 %v352, %v352
        %v360 = vpack.c.bf16 %v353, %v353
        %v361 = vpack.c.bf16 %v354, %v354
        %v362 = vld [vmem:[#allocation4] sm:$0xf]
        %v363 = vld [vmem:[#allocation4 + $0x4] sm:$0xf]
        %v364 = vld [vmem:[#allocation4 + $0x8] sm:$0xf]
        %v365 = vld [vmem:[#allocation4 + $0xc] sm:$0xf]
        %v366 = vld [vmem:[#allocation4 + $0x10] sm:$0xf]
        %v367 = vld [vmem:[#allocation4 + $0x14] sm:$0xf]
        %v368 = vld [vmem:[#allocation4 + $0x18] sm:$0xf]
        %v369 = vld [vmem:[#allocation4 + $0x1c] sm:$0xf]
        %v370 = vld [vmem:[#allocation4 + $0x20] sm:$0xf]
        %v371 = vld [vmem:[#allocation4 + $0x24] sm:$0xf]
        %v372 = vld [vmem:[#allocation4 + $0x28] sm:$0xf]
        %v373 = vld [vmem:[#allocation4 + $0x2c] sm:$0xf]
        %v374 = vld [vmem:[#allocation4 + $0x30] sm:$0xf]
        %v375 = vld [vmem:[#allocation4 + $0x34] sm:$0xf]
        %v376 = vld [vmem:[#allocation4 + $0x38] sm:$0xf]
        %v377 = vld [vmem:[#allocation4 + $0x3c] sm:$0xf]
        %v378 = vld [vmem:[#allocation4 + $0x40] sm:$0xf]
        %v379 = vld [vmem:[#allocation4 + $0x44] sm:$0xf]
        %v380 = vld [vmem:[#allocation4 + $0x48] sm:$0xf]
        %v381 = vld [vmem:[#allocation4 + $0x4c] sm:$0xf]
        %v382 = vld [vmem:[#allocation4 + $0x50] sm:$0xf]
        %v383 = vld [vmem:[#allocation4 + $0x54] sm:$0xf]
        %v384 = vld [vmem:[#allocation4 + $0x58] sm:$0xf]
        %v385 = vld [vmem:[#allocation4 + $0x5c] sm:$0xf]
        %v386 = vld [vmem:[#allocation4 + $0x60] sm:$0xf]
        %v387 = vld [vmem:[#allocation4 + $0x64] sm:$0xf]
        %v388 = vld [vmem:[#allocation4 + $0x68] sm:$0xf]
        %v389 = vld [vmem:[#allocation4 + $0x6c] sm:$0xf]
        %v390 = vld [vmem:[#allocation4 + $0x70] sm:$0xf]
        %v391 = vld [vmem:[#allocation4 + $0x74] sm:$0xf]
        %v392 = vld [vmem:[#allocation4 + $0x78] sm:$0xf]
        %v393 = vld [vmem:[#allocation4 + $0x7c] sm:$0xf]
        %v394 = vld [vmem:[#allocation4 + $0x80] sm:$0xf]
        %v395 = vld [vmem:[#allocation4 + $0x84] sm:$0xf]
        %v396 = vld [vmem:[#allocation4 + $0x88] sm:$0xf]
        %v397 = vld [vmem:[#allocation4 + $0x8c] sm:$0xf]
        %v398 = vld [vmem:[#allocation4 + $0x90] sm:$0xf]
        %v399 = vld [vmem:[#allocation4 + $0x94] sm:$0xf]
        %v400 = vld [vmem:[#allocation4 + $0x98] sm:$0xf]
        %v401 = vld [vmem:[#allocation4 + $0x9c] sm:$0xf]
        %v402 = vld [vmem:[#allocation4 + $0xa0] sm:$0xf]
        %v403 = vld [vmem:[#allocation4 + $0xa4] sm:$0xf]
        %v404 = vld [vmem:[#allocation4 + $0xa8] sm:$0xf]
        %v405 = vld [vmem:[#allocation4 + $0xac] sm:$0xf]
        %v406 = vld [vmem:[#allocation4 + $0xb0] sm:$0xf]
        %v407 = vld [vmem:[#allocation4 + $0xb4] sm:$0xf]
        %v408 = vld [vmem:[#allocation4 + $0xb8] sm:$0xf]
        %v409 = vld [vmem:[#allocation4 + $0xbc] sm:$0xf]
        %v410 = vld [vmem:[#allocation4 + $0xc0] sm:$0xf]
        %v411 = vld [vmem:[#allocation4 + $0xc4] sm:$0xf]
        %v412 = vld [vmem:[#allocation4 + $0xc8] sm:$0xf]
        %v413 = vld [vmem:[#allocation4 + $0xcc] sm:$0xf]
        %v414 = vld [vmem:[#allocation4 + $0xd0] sm:$0xf]
        %v415 = vld [vmem:[#allocation4 + $0xd4] sm:$0xf]
        %v416 = vld [vmem:[#allocation4 + $0xd8] sm:$0xf]
        %v417 = vld [vmem:[#allocation4 + $0xdc] sm:$0xf]
        %v418 = vld [vmem:[#allocation4 + $0xe0] sm:$0xf]
        %v419 = vld [vmem:[#allocation4 + $0xe4] sm:$0xf]
        %v420 = vld [vmem:[#allocation4 + $0xe8] sm:$0xf]
        %v421 = vld [vmem:[#allocation4 + $0xec] sm:$0xf]
        %v422 = vld [vmem:[#allocation4 + $0xf0] sm:$0xf]
        %v423 = vld [vmem:[#allocation4 + $0xf4] sm:$0xf]
        %v424 = vld [vmem:[#allocation4 + $0xf8] sm:$0xf]
        %v425 = vld [vmem:[#allocation4 + $0xfc] sm:$0xf]
        %v426 = vld [vmem:[#allocation4 + $0x100] sm:$0xf]
        %v427 = vld [vmem:[#allocation4 + $0x104] sm:$0xf]
        %v428 = vld [vmem:[#allocation4 + $0x108] sm:$0xf]
        %v429 = vld [vmem:[#allocation4 + $0x10c] sm:$0xf]
        %v430 = vld [vmem:[#allocation4 + $0x110] sm:$0xf]
        %v431 = vld [vmem:[#allocation4 + $0x114] sm:$0xf]
        %v432 = vld [vmem:[#allocation4 + $0x118] sm:$0xf]
        %v433 = vld [vmem:[#allocation4 + $0x11c] sm:$0xf]
        %v434 = vld [vmem:[#allocation4 + $0x120] sm:$0xf]
        %v435 = vld [vmem:[#allocation4 + $0x124] sm:$0xf]
        %v436 = vld [vmem:[#allocation4 + $0x128] sm:$0xf]
        %v437 = vld [vmem:[#allocation4 + $0x12c] sm:$0xf]
        %v438 = vld [vmem:[#allocation4 + $0x130] sm:$0xf]
        %v439 = vld [vmem:[#allocation4 + $0x134] sm:$0xf]
        %v440 = vld [vmem:[#allocation4 + $0x138] sm:$0xf]
        %v441 = vld [vmem:[#allocation4 + $0x13c] sm:$0xf]
        %v442 = vld [vmem:[#allocation4 + $0x140] sm:$0xf]
        %v443 = vld [vmem:[#allocation4 + $0x144] sm:$0xf]
        %v444 = vld [vmem:[#allocation4 + $0x148] sm:$0xf]
        %v445 = vld [vmem:[#allocation4 + $0x14c] sm:$0xf]
        %v446 = vld [vmem:[#allocation4 + $0x150] sm:$0xf]
        %v447 = vld [vmem:[#allocation4 + $0x154] sm:$0xf]
        %v448 = vld [vmem:[#allocation4 + $0x158] sm:$0xf]
        %v449 = vld [vmem:[#allocation4 + $0x15c] sm:$0xf]
        %v450 = vld [vmem:[#allocation4 + $0x160] sm:$0xf]
        %v451 = vld [vmem:[#allocation4 + $0x164] sm:$0xf]
        %v452 = vld [vmem:[#allocation4 + $0x168] sm:$0xf]
        %v453 = vld [vmem:[#allocation4 + $0x16c] sm:$0xf]
        %v454 = vld [vmem:[#allocation4 + $0x170] sm:$0xf]
        %v455 = vld [vmem:[#allocation4 + $0x174] sm:$0xf]
        %v456 = vld [vmem:[#allocation4 + $0x178] sm:$0xf]
        %v457 = vld [vmem:[#allocation4 + $0x17c] sm:$0xf]
        %v458 = vld [vmem:[#allocation4 + $0x180] sm:$0xf]
        %v459 = vld [vmem:[#allocation4 + $0x184] sm:$0xf]
        %v460 = vld [vmem:[%s2] sm:$0x1]
        %v462 = vperm.slane %v460, 0
        %v562 = vunpack.c.l.b16 %v362
        %v563 = vunpack.c.l.b16 %v363
        %v564 = vunpack.c.l.b16 %v364
        %v565 = vunpack.c.l.b16 %v365
        %v566 = vunpack.c.l.b16 %v366
        %v567 = vunpack.c.l.b16 %v367
        %v568 = vunpack.c.l.b16 %v368
        %v569 = vunpack.c.l.b16 %v369
        %v570 = vunpack.c.l.b16 %v370
        %v571 = vunpack.c.l.b16 %v371
        %v572 = vunpack.c.l.b16 %v372
        %v573 = vunpack.c.l.b16 %v373
        %v574 = vunpack.c.l.b16 %v374
        %v575 = vunpack.c.l.b16 %v375
        %v576 = vunpack.c.l.b16 %v376
        %v577 = vunpack.c.l.b16 %v377
        %v578 = vunpack.c.l.b16 %v378
        %v579 = vunpack.c.l.b16 %v379
        %v580 = vunpack.c.l.b16 %v380
        %v581 = vunpack.c.l.b16 %v381
        %v582 = vunpack.c.l.b16 %v382
        %v583 = vunpack.c.l.b16 %v383
        %v584 = vunpack.c.l.b16 %v384
        %v585 = vunpack.c.l.b16 %v385
        %v586 = vunpack.c.l.b16 %v386
        %v587 = vunpack.c.l.b16 %v387
        %v588 = vunpack.c.l.b16 %v388
        %v589 = vunpack.c.l.b16 %v389
        %v590 = vunpack.c.l.b16 %v390
        %v591 = vunpack.c.l.b16 %v391
        %v592 = vunpack.c.l.b16 %v392
        %v593 = vunpack.c.l.b16 %v393
        %v594 = vunpack.c.l.b16 %v394
        %v595 = vunpack.c.l.b16 %v395
        %v596 = vunpack.c.l.b16 %v396
        %v597 = vunpack.c.l.b16 %v397
        %v598 = vunpack.c.l.b16 %v398
        %v599 = vunpack.c.l.b16 %v399
        %v600 = vunpack.c.l.b16 %v400
        %v601 = vunpack.c.l.b16 %v401
        %v602 = vunpack.c.l.b16 %v402
        %v603 = vunpack.c.l.b16 %v403
        %v604 = vunpack.c.l.b16 %v404
        %v605 = vunpack.c.l.b16 %v405
        %v606 = vunpack.c.l.b16 %v406
        %v607 = vunpack.c.l.b16 %v407
        %v608 = vunpack.c.l.b16 %v408
        %v609 = vunpack.c.l.b16 %v409
        %v610 = vunpack.c.l.b16 %v410
        %v611 = vunpack.c.l.b16 %v411
        %v612 = vunpack.c.l.b16 %v412
        %v613 = vunpack.c.l.b16 %v413
        %v614 = vunpack.c.l.b16 %v414
        %v615 = vunpack.c.l.b16 %v415
        %v616 = vunpack.c.l.b16 %v416
        %v617 = vunpack.c.l.b16 %v417
        %v618 = vunpack.c.l.b16 %v418
        %v619 = vunpack.c.l.b16 %v419
        %v620 = vunpack.c.l.b16 %v420
        %v621 = vunpack.c.l.b16 %v421
        %v622 = vunpack.c.l.b16 %v422
        %v623 = vunpack.c.l.b16 %v423
        %v624 = vunpack.c.l.b16 %v424
        %v625 = vunpack.c.l.b16 %v425
        %v626 = vunpack.c.l.b16 %v426
        %v627 = vunpack.c.l.b16 %v427
        %v628 = vunpack.c.l.b16 %v428
        %v629 = vunpack.c.l.b16 %v429
        %v630 = vunpack.c.l.b16 %v430
        %v631 = vunpack.c.l.b16 %v431
        %v632 = vunpack.c.l.b16 %v432
        %v633 = vunpack.c.l.b16 %v433
        %v634 = vunpack.c.l.b16 %v434
        %v635 = vunpack.c.l.b16 %v435
        %v636 = vunpack.c.l.b16 %v436
        %v637 = vunpack.c.l.b16 %v437
        %v638 = vunpack.c.l.b16 %v438
        %v639 = vunpack.c.l.b16 %v439
        %v640 = vunpack.c.l.b16 %v440
        %v641 = vunpack.c.l.b16 %v441
        %v642 = vunpack.c.l.b16 %v442
        %v643 = vunpack.c.l.b16 %v443
        %v644 = vunpack.c.l.b16 %v444
        %v645 = vunpack.c.l.b16 %v445
        %v646 = vunpack.c.l.b16 %v446
        %v647 = vunpack.c.l.b16 %v447
        %v648 = vunpack.c.l.b16 %v448
        %v649 = vunpack.c.l.b16 %v449
        %v650 = vunpack.c.l.b16 %v450
        %v651 = vunpack.c.l.b16 %v451
        %v652 = vunpack.c.l.b16 %v452
        %v653 = vunpack.c.l.b16 %v453
        %v654 = vunpack.c.l.b16 %v454
        %v655 = vunpack.c.l.b16 %v455
        %v656 = vunpack.c.l.b16 %v456
        %v657 = vunpack.c.l.b16 %v457
        %v658 = vunpack.c.l.b16 %v458
        %v659 = vunpack.c.l.b16 %v459
        %v660 = vpack.c.b16 %v563, %v562
        %v661 = vpack.c.b16 %v565, %v564
        %v662 = vpack.c.b16 %v567, %v566
        %v663 = vpack.c.b16 %v569, %v568
        %v664 = vpack.c.b16 %v571, %v570
        %v665 = vpack.c.b16 %v573, %v572
        %v666 = vpack.c.b16 %v575, %v574
        %v667 = vpack.c.b16 %v577, %v576
        %v668 = vpack.c.b16 %v579, %v578
        %v669 = vpack.c.b16 %v581, %v580
        %v670 = vpack.c.b16 %v583, %v582
        %v671 = vpack.c.b16 %v585, %v584
        %v672 = vpack.c.b16 %v587, %v586
        %v673 = vpack.c.b16 %v589, %v588
        %v674 = vpack.c.b16 %v591, %v590
        %v675 = vpack.c.b16 %v593, %v592
        %v676 = vpack.c.b16 %v595, %v594
        %v677 = vpack.c.b16 %v597, %v596
        %v678 = vpack.c.b16 %v599, %v598
        %v679 = vpack.c.b16 %v601, %v600
        %v680 = vpack.c.b16 %v603, %v602
        %v681 = vpack.c.b16 %v605, %v604
        %v682 = vpack.c.b16 %v607, %v606
        %v683 = vpack.c.b16 %v609, %v608
        %v684 = vpack.c.b16 %v611, %v610
        %v685 = vpack.c.b16 %v613, %v612
        %v686 = vpack.c.b16 %v615, %v614
        %v687 = vpack.c.b16 %v617, %v616
        %v688 = vpack.c.b16 %v619, %v618
        %v689 = vpack.c.b16 %v621, %v620
        %v690 = vpack.c.b16 %v623, %v622
        %v691 = vpack.c.b16 %v625, %v624
        %v692 = vpack.c.b16 %v627, %v626
        %v693 = vpack.c.b16 %v629, %v628
        %v694 = vpack.c.b16 %v631, %v630
        %v695 = vpack.c.b16 %v633, %v632
        %v696 = vpack.c.b16 %v635, %v634
        %v697 = vpack.c.b16 %v637, %v636
        %v698 = vpack.c.b16 %v639, %v638
        %v699 = vpack.c.b16 %v641, %v640
        %v700 = vpack.c.b16 %v643, %v642
        %v701 = vpack.c.b16 %v645, %v644
        %v702 = vpack.c.b16 %v647, %v646
        %v703 = vpack.c.b16 %v649, %v648
        %v704 = vpack.c.b16 %v651, %v650
        %v705 = vpack.c.b16 %v653, %v652
        %v706 = vpack.c.b16 %v655, %v654
        %v707 = vpack.c.b16 %v657, %v656
        %v708 = vpack.c.b16 %v659, %v658
        %vm758 = vcmask 130048
        %v760 = vsel %vm758, %v361, 0
        %762 = vmatpush.bf16.msra.mxu0 %v667
        %763 = vmatpush.bf16.msra.mxu0 %v666
        %764 = vmatpush.bf16.msra.mxu0 %v665
        %765 = vmatpush.bf16.msra.mxu0 %v664
        %766 = vmatpush.bf16.msra.mxu0 %v663
        %767 = vmatpush.bf16.msra.mxu0 %v662
        %768 = vmatpush.bf16.msra.mxu0 %v661
        %769 = vmatpush.bf16.msra.mxu0 %v660
        %770 = vmatmul.bf16.gmra.mxu0 %v355
        %v771 = vpop.f32.mrf.mxu0
        %v772 = vadd.f32 %v462, %v771
        %v773 = vpop.f32.mrf.mxu0
        %774 = vdwg.mxu0
        %775 = vmatpush.bf16.msra.mxu0 %v675
        %776 = vmatpush.bf16.msra.mxu0 %v674
        %777 = vmatpush.bf16.msra.mxu0 %v673
        %778 = vmatpush.bf16.msra.mxu0 %v672
        %779 = vmatpush.bf16.msra.mxu0 %v671
        %780 = vmatpush.bf16.msra.mxu0 %v670
        %781 = vmatpush.bf16.msra.mxu0 %v669
        %782 = vmatpush.bf16.msra.mxu0 %v668
        %783 = vmatmul.bf16.gmra.mxu0 %v356
        %v784 = vpop.f32.mrf.mxu0
        %v785 = vadd.f32 %v772, %v784
        %v786 = vpop.f32.mrf.mxu0
        %787 = vdwg.mxu0
        %788 = vmatpush.bf16.msra.mxu0 %v683
        %789 = vmatpush.bf16.msra.mxu0 %v682
        %790 = vmatpush.bf16.msra.mxu0 %v681
        %791 = vmatpush.bf16.msra.mxu0 %v680
        %792 = vmatpush.bf16.msra.mxu0 %v679
        %793 = vmatpush.bf16.msra.mxu0 %v678
        %794 = vmatpush.bf16.msra.mxu0 %v677
        %795 = vmatpush.bf16.msra.mxu0 %v676
        %796 = vmatmul.bf16.gmra.mxu0 %v357
        %v797 = vpop.f32.mrf.mxu0
        %v798 = vadd.f32 %v785, %v797
        %v799 = vpop.f32.mrf.mxu0
        %800 = vdwg.mxu0
        %801 = vmatpush.bf16.msra.mxu0 %v691
        %802 = vmatpush.bf16.msra.mxu0 %v690
        %803 = vmatpush.bf16.msra.mxu0 %v689
        %804 = vmatpush.bf16.msra.mxu0 %v688
        %805 = vmatpush.bf16.msra.mxu0 %v687
        %806 = vmatpush.bf16.msra.mxu0 %v686
        %807 = vmatpush.bf16.msra.mxu0 %v685
        %808 = vmatpush.bf16.msra.mxu0 %v684
        %809 = vmatmul.bf16.gmra.mxu0 %v358
        %v810 = vpop.f32.mrf.mxu0
        %v811 = vadd.f32 %v798, %v810
        %v812 = vpop.f32.mrf.mxu0
        %813 = vdwg.mxu0
        %814 = vmatpush.bf16.msra.mxu0 %v699
        %815 = vmatpush.bf16.msra.mxu0 %v698
        %816 = vmatpush.bf16.msra.mxu0 %v697
        %817 = vmatpush.bf16.msra.mxu0 %v696
        %818 = vmatpush.bf16.msra.mxu0 %v695
        %819 = vmatpush.bf16.msra.mxu0 %v694
        %820 = vmatpush.bf16.msra.mxu0 %v693
        %821 = vmatpush.bf16.msra.mxu0 %v692
        %822 = vmatmul.bf16.gmra.mxu0 %v359
        %v823 = vpop.f32.mrf.mxu0
        %v824 = vadd.f32 %v811, %v823
        %v825 = vpop.f32.mrf.mxu0
        %826 = vdwg.mxu0
        %827 = vmatpush.bf16.msra.mxu0 %v707
        %828 = vmatpush.bf16.msra.mxu0 %v706
        %829 = vmatpush.bf16.msra.mxu0 %v705
        %830 = vmatpush.bf16.msra.mxu0 %v704
        %831 = vmatpush.bf16.msra.mxu0 %v703
        %832 = vmatpush.bf16.msra.mxu0 %v702
        %833 = vmatpush.bf16.msra.mxu0 %v701
        %834 = vmatpush.bf16.msra.mxu0 %v700
        %835 = vmatmul.bf16.gmra.mxu0 %v360
        %v836 = vpop.f32.mrf.mxu0
        %v837 = vadd.f32 %v824, %v836
        %v838 = vpop.f32.mrf.mxu0
        %839 = vdwg.mxu0
        %840 = vmatpush.bf16.msra.mxu0 0
        %841 = vmatpush.bf16.msra.mxu0 0
        %842 = vmatpush.bf16.msra.mxu0 0
        %843 = vmatpush.bf16.msra.mxu0 0
        %844 = vmatpush.bf16.msra.mxu0 0
        %845 = vmatpush.bf16.msra.mxu0 0
        %846 = vmatpush.bf16.msra.mxu0 0
        %847 = vmatpush.bf16.msra.mxu0 %v708
        %848 = vmatmul.bf16.gmra.mxu0 %v760
        %v849 = vpop.f32.mrf.mxu0
        %v850 = vadd.f32 %v837, %v849
        %v851 = vpop.f32.mrf.mxu0
        %852 = vdwg.mxu0
        %v853 = vmax.f32 %v850, 0.0
        %v854 = vpack.c.bf16 %v853, %v853
        %v855 = vld [vmem:[#allocation6] sm:$0xf]
        %v856 = vld [vmem:[#allocation6 + $0x4] sm:$0xf]
        %v857 = vld [vmem:[#allocation6 + $0x8] sm:$0xf]
        %v858 = vld [vmem:[#allocation6 + $0xc] sm:$0xf]
        %v859 = vld [vmem:[#allocation6 + $0x10] sm:$0xf]
        %v860 = vld [vmem:[#allocation6 + $0x14] sm:$0xf]
        %v861 = vld [vmem:[#allocation6 + $0x18] sm:$0xf]
        %v862 = vld [vmem:[#allocation6 + $0x1c] sm:$0xf]
        %v863 = vld [vmem:[#allocation6 + $0x20] sm:$0xf]
        %v864 = vld [vmem:[#allocation6 + $0x24] sm:$0xf]
        %v865 = vld [vmem:[#allocation6 + $0x28] sm:$0xf]
        %v866 = vld [vmem:[#allocation6 + $0x2c] sm:$0xf]
        %v867 = vld [vmem:[#allocation6 + $0x30] sm:$0xf]
        %v868 = vld [vmem:[#allocation6 + $0x34] sm:$0xf]
        %v869 = vld [vmem:[#allocation6 + $0x38] sm:$0xf]
        %v870 = vld [vmem:[#allocation6 + $0x3c] sm:$0xf]
        %v871 = vld [vmem:[%s4] sm:$0x1]
        %v873 = vperm.slane %v871, 0
        %v891 = vunpack.c.l.b16 %v855
        %v892 = vunpack.c.l.b16 %v856
        %v893 = vunpack.c.l.b16 %v857
        %v894 = vunpack.c.l.b16 %v858
        %v895 = vunpack.c.l.b16 %v859
        %v896 = vunpack.c.l.b16 %v860
        %v897 = vunpack.c.l.b16 %v861
        %v898 = vunpack.c.l.b16 %v862
        %v899 = vunpack.c.l.b16 %v863
        %v900 = vunpack.c.l.b16 %v864
        %v901 = vunpack.c.l.b16 %v865
        %v902 = vunpack.c.l.b16 %v866
        %v903 = vunpack.c.l.b16 %v867
        %v904 = vunpack.c.l.b16 %v868
        %v905 = vunpack.c.l.b16 %v869
        %v906 = vunpack.c.l.b16 %v870
        %v907 = vpack.c.b16 %v892, %v891
        %v908 = vpack.c.b16 %v894, %v893
        %v909 = vpack.c.b16 %v896, %v895
        %v910 = vpack.c.b16 %v898, %v897
        %v911 = vpack.c.b16 %v900, %v899
        %v912 = vpack.c.b16 %v902, %v901
        %v913 = vpack.c.b16 %v904, %v903
        %v914 = vpack.c.b16 %v906, %v905
        %923 = vmatpush.bf16.msra.mxu0 %v914
        %924 = vmatpush.bf16.msra.mxu0 %v913
        %925 = vmatpush.bf16.msra.mxu0 %v912
        %926 = vmatpush.bf16.msra.mxu0 %v911
        %927 = vmatpush.bf16.msra.mxu0 %v910
        %928 = vmatpush.bf16.msra.mxu0 %v909
        %929 = vmatpush.bf16.msra.mxu0 %v908
        %930 = vmatpush.bf16.msra.mxu0 %v907
        %931 = vmatmul.bf16.gmra.mxu0 %v854
        %v932 = vpop.f32.mrf.mxu0
        %v933 = vadd.f32 %v873, %v932
        %v934 = vpop.f32.mrf.mxu0
        %935 = vdwg.mxu0
        %v936 = vmax.f32 %v933, 0.0
        %v937 = vpack.c.bf16 %v936, %v936
        %v938 = vld [vmem:[#allocation7] sm:$0xf]
        %v939 = vld [vmem:[#allocation7 + $0x4] sm:$0xf]
        %v940 = vld [vmem:[#allocation7 + $0x8] sm:$0xf]
        %v941 = vld [vmem:[#allocation7 + $0xc] sm:$0xf]
        %v942 = vld [vmem:[#allocation7 + $0x10] sm:$0xf]
        %v943 = vld [vmem:[#allocation7 + $0x14] sm:$0xf]
        %v944 = vld [vmem:[#allocation7 + $0x18] sm:$0xf]
        %v945 = vld [vmem:[#allocation7 + $0x1c] sm:$0xf]
        %v946 = vld [vmem:[#allocation7 + $0x20] sm:$0xf]
        %v947 = vld [vmem:[#allocation7 + $0x24] sm:$0xf]
        %v948 = vld [vmem:[#allocation7 + $0x28] sm:$0xf]
        %v949 = vld [vmem:[#allocation7 + $0x2c] sm:$0xf]
        %v950 = vld [vmem:[#allocation7 + $0x30] sm:$0xf]
        %v951 = vld [vmem:[#allocation7 + $0x34] sm:$0xf]
        %v952 = vld [vmem:[#allocation7 + $0x38] sm:$0xf]
        %v953 = vld [vmem:[#allocation7 + $0x3c] sm:$0xf]
        %v954 = vld [vmem:[%s6] sm:$0x1]
        %v956 = vperm.slane %v954, 0
        %v974 = vunpack.c.l.b16 %v938
        %v975 = vunpack.c.l.b16 %v939
        %v976 = vunpack.c.l.b16 %v940
        %v977 = vunpack.c.l.b16 %v941
        %v978 = vunpack.c.l.b16 %v942
        %v979 = vunpack.c.l.b16 %v943
        %v980 = vunpack.c.l.b16 %v944
        %v981 = vunpack.c.l.b16 %v945
        %v982 = vunpack.c.l.b16 %v946
        %v983 = vunpack.c.l.b16 %v947
        %v984 = vunpack.c.l.b16 %v948
        %v985 = vunpack.c.l.b16 %v949
        %v986 = vunpack.c.l.b16 %v950
        %v987 = vunpack.c.l.b16 %v951
        %v988 = vunpack.c.l.b16 %v952
        %v989 = vunpack.c.l.b16 %v953
        %v990 = vpack.c.b16 %v975, %v974
        %v991 = vpack.c.b16 %v977, %v976
        %v992 = vpack.c.b16 %v979, %v978
        %v993 = vpack.c.b16 %v981, %v980
        %v994 = vpack.c.b16 %v983, %v982
        %v995 = vpack.c.b16 %v985, %v984
        %v996 = vpack.c.b16 %v987, %v986
        %v997 = vpack.c.b16 %v989, %v988
        %1006 = vmatpush.bf16.msra.mxu0 %v997
        %1007 = vmatpush.bf16.msra.mxu0 %v996
        %1008 = vmatpush.bf16.msra.mxu0 %v995
        %1009 = vmatpush.bf16.msra.mxu0 %v994
        %1010 = vmatpush.bf16.msra.mxu0 %v993
        %1011 = vmatpush.bf16.msra.mxu0 %v992
        %1012 = vmatpush.bf16.msra.mxu0 %v991
        %1013 = vmatpush.bf16.msra.mxu0 %v990
        %1014 = vmatmul.bf16.gmra.mxu0 %v937
        %v1015 = vpop.f32.mrf.mxu0
        %v1016 = vadd.f32 %v956, %v1015
        %v1017 = vpop.f32.mrf.mxu0
        %1018 = vdwg.mxu0
        %v1019 = vpack.c.bf16 %v1016, %v1016
        %1020 = vst [vmem:[%s346] sm:$0xf] %v1019
        %p1021 = scmp.lt.s32.totalorder %s23, 1
        %s1022 = scalar_select %p1021, %s23, 1
        %s1023 = smul.addr %s1022, 4
        %s1024 = scalar_lea.vmem %s7, %s1023
        // Predicated region
        $region65: #{mlp_forward.1} parent=47 // pred_check
          %p1025 = pneg %p193
        $region66: #{mlp_forward.1} parent=47 // pred_check_branch
          %1027 = sbr.rel (%p1025) target = $region68
        $region67: #{mlp_forward.1} parent=47 // pred_region
          _
        $region68: #{mlp_forward.1} parent=47 // pred_fallthru
          _
      $region48: #{mlp_forward.1} parent=5 // pred_fallthru
        _
      %p1028 = scmp.le.s32.totalorder 2, %s18
      // Predicated region
      $region69: #{mlp_forward.1} parent=5 // pred_check
        %p1029 = pneg %p1028
      $region70: #{mlp_forward.1} parent=5 // pred_check_branch
        %1031 = sbr.rel (%p1029) target = $region72
      $region71: #{mlp_forward.1} parent=5 // pred_region
        %s1032 = ssub.s32 %s18, 2
        // Predicated region
        $region73: #{mlp_forward.1} parent=71 // pred_check
          %p1033 = pneg %p199
        $region74: #{mlp_forward.1} parent=71 // pred_check_branch
          %1035 = sbr.rel (%p1033) target = $region76
        $region75: #{mlp_forward.1} parent=71 // pred_region
          %p1036 = scmp.lt.s32.totalorder %s24, 1
          %s1037 = scalar_select %p1036, %s24, 1
          %s1038 = smul.addr %s1037, 4
          %s1039 = scalar_lea.vmem %s7, %s1038
        $region76: #{mlp_forward.1} parent=71 // pred_fallthru
          _
      $region72: #{mlp_forward.1} parent=5 // pred_fallthru
        _
    $region6: #{mlp_forward.1} parent=1 // loop_footer
      %s22 = sadd.s32 1, %s18
    $region7: #{mlp_forward.1} parent=1 // loop_footer_branch
      %17 = sbr.rel target = $region3
    $region8: #{mlp_forward.1} parent=1 // loop_exit
      _
    %1040 = vsyncpa [#allocation3], 1
    %s1041 = scalar_lea.sflag [#allocation3], 1
    %1042 = vsyncpa %s1041, 1
    %1043 = vsyncpa [#allocation5], 1
    %1044 = vsyncpa [#allocation8], 1

</llo_original>
